<compile_context>
chip_gen: v5e
topology: v5e:2x2
jax: 0.10.0
libtpu: 0.0.40
codegen_flags: <defaults>
</compile_context>

<pallas_src>
import jax
import jax.numpy as jnp
from jax import lax
from jax.experimental import pallas as pl
from jax.experimental.pallas import tpu as pltpu


def attention_kernel(x_ref, wq_ref, wk_ref, wv_ref, wp_ref, bproj_ref,
                     o_ref, acc_ref):
    """One grid step = (batch b, head h)."""
    h = pl.program_id(1)
    last_h = pl.num_programs(1) - 1

    @pl.when(h == 0)
    def _():
        acc_ref[...] = jnp.zeros_like(acc_ref)

    x = x_ref[0]          # (N, D)  bf16
    wq = wq_ref[0]        # (D, d)  bf16  (softmax scale pre-folded)
    wk = wk_ref[0]        # (D, d)  bf16
    wv = wv_ref[0]        # (D, d)  bf16

    # per-head q/k/v projections (f32 accumulation, bf16 operands downstream)
    q = jnp.dot(x, wq, preferred_element_type=jnp.float32).astype(jnp.bfloat16)
    k = jnp.dot(x, wk, preferred_element_type=jnp.float32).astype(jnp.bfloat16)
    v = jnp.dot(x, wv, preferred_element_type=jnp.float32).astype(jnp.bfloat16)

    # scores = q @ k^T : contraction on last dims, no explicit transpose of k
    dots = lax.dot_general(q, k, (((1,), (1,)), ((), ())),
                           preferred_element_type=jnp.float32)    # (N, N) f32

    # softmax over the last axis
    dots = dots - jnp.max(dots, axis=-1, keepdims=True)
    e = jnp.exp(dots)
    inv_l = pl.reciprocal(jnp.sum(e, axis=-1, keepdims=True), approx=True)
    p = (e * inv_l).astype(jnp.bfloat16)                          # (N, N) bf16

    out_h = jnp.dot(p, v, preferred_element_type=jnp.float32)     # (N, d) f32

    # accumulate this head's slice of the output projection into (N, D) f32
    acc_ref[...] += jnp.dot(out_h.astype(jnp.bfloat16), wp_ref[0],
                            preferred_element_type=jnp.float32)

    @pl.when(h == last_h)
    def _():
        # bias kept in f32; single lane-dense (1, N, D) store per batch
        o_ref[0] = (acc_ref[...] + bproj_ref[...]).astype(o_ref.dtype)


def attention_forward(x, w_qkv, w_proj, b_proj, *, num_heads):
    """x: (B, N, D); w_qkv: (D, 3D) stored (in, out) with columns ordered
    (qkv, head, d) as in the module; w_proj: (D, D) stored (in, out);
    b_proj: (1, D)."""
    B, N, D = x.shape
    H = num_heads
    d = D // H
    scale = d ** (-0.5)

    # Host-side layout plumbing: per-head weight splits, scale folded into W_q,
    # bf16 operands (accumulation stays f32 inside the kernel).
    w = w_qkv.reshape(D, 3, H, d)
    w_q = (jnp.transpose(w[:, 0], (1, 0, 2)) * scale).astype(jnp.bfloat16)  # (H, D, d)
    w_k = jnp.transpose(w[:, 1], (1, 0, 2)).astype(jnp.bfloat16)            # (H, D, d)
    w_v = jnp.transpose(w[:, 2], (1, 0, 2)).astype(jnp.bfloat16)            # (H, D, d)
    w_p = w_proj.reshape(H, d, D).astype(jnp.bfloat16)                      # (H, d, D)
    x_bf16 = x.astype(jnp.bfloat16)
    b_proj_f32 = b_proj.astype(jnp.float32)

    return pl.pallas_call(
        attention_kernel,
        out_shape=jax.ShapeDtypeStruct((B, N, D), x.dtype),
        grid=(B, H),
        in_specs=[
            pl.BlockSpec((1, N, D), lambda b, h: (b, 0, 0)),   # x (per batch)
            pl.BlockSpec((1, D, d), lambda b, h: (h, 0, 0)),   # w_q (per head)
            pl.BlockSpec((1, D, d), lambda b, h: (h, 0, 0)),   # w_k
            pl.BlockSpec((1, D, d), lambda b, h: (h, 0, 0)),   # w_v
            pl.BlockSpec((1, d, D), lambda b, h: (h, 0, 0)),   # w_proj per head
            pl.BlockSpec((1, D), lambda b, h: (0, 0)),         # proj bias
        ],
        out_specs=pl.BlockSpec((1, N, D), lambda b, h: (b, 0, 0)),
        scratch_shapes=[pltpu.VMEM((N, D), jnp.float32)],      # proj accumulator
        compiler_params=pltpu.CompilerParams(
            dimension_semantics=("parallel", "arbitrary"),
            vmem_limit_bytes=48 * 1024 * 1024),
    )(x_bf16, w_q, w_k, w_v, w_p, b_proj_f32)


def attention_reference(x, w_qkv, w_proj, b_proj, *, num_heads):
    """Pure-JAX f32 reference mirroring the PyTorch forward."""
    B, N, D = x.shape
    d = D // num_heads
    scale = d ** (-0.5)
    qkv = jnp.einsum('bnd,de->bne', x, w_qkv)                       # (B, N, 3D)
    qkv = qkv.reshape(B, N, 3, num_heads, d)
    q = jnp.transpose(qkv[:, :, 0], (0, 2, 1, 3))                   # (B, H, N, d)
    k = jnp.transpose(qkv[:, :, 1], (0, 2, 1, 3))
    v = jnp.transpose(qkv[:, :, 2], (0, 2, 1, 3))
    dots = jnp.einsum('bhid,bhjd->bhij', q, k) * scale
    attn = jax.nn.softmax(dots, axis=-1)
    out = jnp.einsum('bhij,bhjd->bhid', attn, v)
    out = jnp.transpose(out, (0, 2, 1, 3)).reshape(B, N, D)
    return jnp.einsum('bnd,de->bne', out, w_proj) + b_proj[0]


if __name__ == "__main__":
    # Small shapes consistent with the module: batch=2, seq=8, dim=32, heads=8
    B, N, D, H = 2, 8, 32, 8

    key = jax.random.PRNGKey(0)
    kx, kqkv, kproj, kb = jax.random.split(key, 4)

    x = jax.random.normal(kx, (B, N, D), dtype=jnp.float32)
    w_qkv = 0.02 * jax.random.normal(kqkv, (D, 3 * D), dtype=jnp.float32)
    w_proj = 0.02 * jax.random.normal(kproj, (D, D), dtype=jnp.float32)
    b_proj = 0.01 * jax.random.normal(kb, (1, D), dtype=jnp.float32)

    out = attention_forward(x, w_qkv, w_proj, b_proj, num_heads=H)
    out = jax.block_until_ready(out)

    ref = attention_reference(x, w_qkv, w_proj, b_proj, num_heads=H)
    assert out.shape == (B, N, D)
    # bf16 operands inside the kernel -> loosened tolerance vs the f32 reference
    assert jnp.allclose(out, ref, atol=3e-3, rtol=3e-2), "mismatch vs reference"

    print("KERNEL_OK")
</pallas_src>

<mosaic_0001>
module attributes {stable_mosaic.version = 11 : i64} {
  func.func @attention_kernel(%arg0: i32, %arg1: i32, %arg2: memref<1x8x32xbf16, #tpu.memory_space<vmem>>, %arg3: memref<1x32x4xbf16, #tpu.memory_space<vmem>>, %arg4: memref<1x32x4xbf16, #tpu.memory_space<vmem>>, %arg5: memref<1x32x4xbf16, #tpu.memory_space<vmem>>, %arg6: memref<1x4x32xbf16, #tpu.memory_space<vmem>>, %arg7: memref<1x32xf32, #tpu.memory_space<vmem>>, %arg8: memref<1x8x32xf32, #tpu.memory_space<vmem>>, %arg9: memref<8x32xf32, #tpu.memory_space<vmem>>) attributes {dimension_semantics = [#tpu.dimension_semantics<parallel>, #tpu.dimension_semantics<arbitrary>], iteration_bounds = array<i64: 2, 8>, scalar_prefetch = 0 : i64, scratch_operands = 1 : i64, tpu.core_type = #tpu.core_type<tc>, window_params = [{transform_indices = @transform_0, window_bounds = array<i64: 1, 8, 32>}, {transform_indices = @transform_1, window_bounds = array<i64: 1, 32, 4>}, {transform_indices = @transform_2, window_bounds = array<i64: 1, 32, 4>}, {transform_indices = @transform_3, window_bounds = array<i64: 1, 32, 4>}, {transform_indices = @transform_4, window_bounds = array<i64: 1, 4, 32>}, {pipeline_mode = #tpu.pipeline_mode<synchronous>, transform_indices = @transform_5, window_bounds = array<i64: 1, 32>}, {transform_indices = @transform_6, window_bounds = array<i64: 1, 8, 32>}]} {
    %c0_i32 = arith.constant 0 : i32
    %0 = arith.cmpi eq, %arg1, %c0_i32 : i32
    %1 = arith.extui %0 : i1 to i32
    %c0_i32_0 = arith.constant 0 : i32
    %2 = arith.cmpi ne, %1, %c0_i32_0 : i32
    scf.if %2 {
      %cst_27 = arith.constant 0.000000e+00 : f32
      %40 = vector.broadcast %cst_27 : f32 to vector<8x32xf32>
      %c0_28 = arith.constant 0 : index
      %c0_29 = arith.constant 0 : index
      %41 = vector.load %arg9[%c0_28, %c0_29] : memref<8x32xf32, #tpu.memory_space<vmem>>, vector<8x32xf32>
      tpu.vector_store %arg9[%c0_28, %c0_29], %40 {strides = array<i32>} : memref<8x32xf32, #tpu.memory_space<vmem>>, vector<8x32xf32>,
    } else {
    }
    %c0 = arith.constant 0 : index
    %c0_1 = arith.constant 0 : index
    %c0_2 = arith.constant 0 : index
    %3 = vector.load %arg2[%c0, %c0_1, %c0_2] : memref<1x8x32xbf16, #tpu.memory_space<vmem>>, vector<1x8x32xbf16>
    %4 = vector.shape_cast %3 : vector<1x8x32xbf16> to vector<8x32xbf16>
    %c0_3 = arith.constant 0 : index
    %c0_4 = arith.constant 0 : index
    %c0_5 = arith.constant 0 : index
    %5 = vector.load %arg3[%c0_3, %c0_4, %c0_5] : memref<1x32x4xbf16, #tpu.memory_space<vmem>>, vector<1x32x4xbf16>
    %6 = vector.shape_cast %5 : vector<1x32x4xbf16> to vector<32x4xbf16>
    %c0_6 = arith.constant 0 : index
    %c0_7 = arith.constant 0 : index
    %c0_8 = arith.constant 0 : index
    %7 = vector.load %arg4[%c0_6, %c0_7, %c0_8] : memref<1x32x4xbf16, #tpu.memory_space<vmem>>, vector<1x32x4xbf16>
    %8 = vector.shape_cast %7 : vector<1x32x4xbf16> to vector<32x4xbf16>
    %c0_9 = arith.constant 0 : index
    %c0_10 = arith.constant 0 : index
    %c0_11 = arith.constant 0 : index
    %9 = vector.load %arg5[%c0_9, %c0_10, %c0_11] : memref<1x32x4xbf16, #tpu.memory_space<vmem>>, vector<1x32x4xbf16>
    %10 = vector.shape_cast %9 : vector<1x32x4xbf16> to vector<32x4xbf16>
    %cst = arith.constant dense<0.000000e+00> : vector<8x4xf32>
    %11 = tpu.matmul %4, %6, %cst {dimension_numbers = #tpu.dot_dimension_numbers<[1], [0], [0], [1], [0, 0, 1, 1], [], []>} : vector<8x32xbf16>, vector<32x4xbf16>, vector<8x4xf32> -> vector<8x4xf32>
    %12 = arith.truncf %11 : vector<8x4xf32> to vector<8x4xbf16>
    %cst_12 = arith.constant dense<0.000000e+00> : vector<8x4xf32>
    %13 = tpu.matmul %4, %8, %cst_12 {dimension_numbers = #tpu.dot_dimension_numbers<[1], [0], [0], [1], [0, 0, 1, 1], [], []>} : vector<8x32xbf16>, vector<32x4xbf16>, vector<8x4xf32> -> vector<8x4xf32>
    %14 = arith.truncf %13 : vector<8x4xf32> to vector<8x4xbf16>
    %cst_13 = arith.constant dense<0.000000e+00> : vector<8x4xf32>
    %15 = tpu.matmul %4, %10, %cst_13 {dimension_numbers = #tpu.dot_dimension_numbers<[1], [0], [0], [1], [0, 0, 1, 1], [], []>} : vector<8x32xbf16>, vector<32x4xbf16>, vector<8x4xf32> -> vector<8x4xf32>
    %16 = arith.truncf %15 : vector<8x4xf32> to vector<8x4xbf16>
    %cst_14 = arith.constant dense<0.000000e+00> : vector<8x8xf32>
    %17 = tpu.matmul %12, %14, %cst_14 {dimension_numbers = #tpu.dot_dimension_numbers<[1], [1], [0], [0], [0, 0, 1, 0], [], []>} : vector<8x4xbf16>, vector<8x4xbf16>, vector<8x8xf32> -> vector<8x8xf32>
    %cst_15 = arith.constant dense<0xFF800000> : vector<8xf32>
    %18 = vector.multi_reduction <maximumf>, %17, %cst_15 [1] : vector<8x8xf32> to vector<8xf32>
    %19 = vector.shape_cast %18 : vector<8xf32> to vector<8x1xf32>
    %20 = vector.broadcast %19 : vector<8x1xf32> to vector<8x8xf32>
    %21 = arith.subf %17, %20 : vector<8x8xf32>
    %22 = math.exp %21 : vector<8x8xf32>
    %cst_16 = arith.constant dense<0.000000e+00> : vector<8xf32>
    %23 = vector.multi_reduction <add>, %22, %cst_16 [1] : vector<8x8xf32> to vector<8xf32>
    %24 = vector.shape_cast %23 : vector<8xf32> to vector<8x1xf32>
    %25 = tpu.reciprocal %24 {approx = true} : vector<8x1xf32> -> vector<8x1xf32>
    %26 = vector.broadcast %25 : vector<8x1xf32> to vector<8x8xf32>
    %27 = arith.mulf %22, %26 : vector<8x8xf32>
    %28 = arith.truncf %27 : vector<8x8xf32> to vector<8x8xbf16>
    %cst_17 = arith.constant dense<0.000000e+00> : vector<8x4xf32>
    %29 = tpu.matmul %28, %16, %cst_17 {dimension_numbers = #tpu.dot_dimension_numbers<[1], [0], [0], [1], [0, 0, 1, 1], [], []>} : vector<8x8xbf16>, vector<8x4xbf16>, vector<8x4xf32> -> vector<8x4xf32>
    %c0_18 = arith.constant 0 : index
    %c0_19 = arith.constant 0 : index
    %30 = vector.load %arg9[%c0_18, %c0_19] : memref<8x32xf32, #tpu.memory_space<vmem>>, vector<8x32xf32>
    %31 = arith.truncf %29 : vector<8x4xf32> to vector<8x4xbf16>
    %c0_20 = arith.constant 0 : index
    %c0_21 = arith.constant 0 : index
    %c0_22 = arith.constant 0 : index
    %32 = vector.load %arg6[%c0_20, %c0_21, %c0_22] : memref<1x4x32xbf16, #tpu.memory_space<vmem>>, vector<1x4x32xbf16>
    %33 = vector.shape_cast %32 : vector<1x4x32xbf16> to vector<4x32xbf16>
    %cst_23 = arith.constant dense<0.000000e+00> : vector<8x32xf32>
    %34 = tpu.matmul %31, %33, %cst_23 {dimension_numbers = #tpu.dot_dimension_numbers<[1], [0], [0], [1], [0, 0, 1, 1], [], []>} : vector<8x4xbf16>, vector<4x32xbf16>, vector<8x32xf32> -> vector<8x32xf32>
    %35 = arith.addf %30, %34 : vector<8x32xf32>
    %c0_24 = arith.constant 0 : index
    %c0_25 = arith.constant 0 : index
    %36 = vector.load %arg9[%c0_24, %c0_25] : memref<8x32xf32, #tpu.memory_space<vmem>>, vector<8x32xf32>
    tpu.vector_store %arg9[%c0_24, %c0_25], %35 {strides = array<i32>} : memref<8x32xf32, #tpu.memory_space<vmem>>, vector<8x32xf32>,
    %c7_i32 = arith.constant 7 : i32
    %37 = arith.cmpi eq, %arg1, %c7_i32 : i32
    %38 = arith.extui %37 : i1 to i32
    %c0_i32_26 = arith.constant 0 : i32
    %39 = arith.cmpi ne, %38, %c0_i32_26 : i32
    scf.if %39 {
      %c0_27 = arith.constant 0 : index
      %c0_28 = arith.constant 0 : index
      %40 = vector.load %arg9[%c0_27, %c0_28] : memref<8x32xf32, #tpu.memory_space<vmem>>, vector<8x32xf32>
      %c0_29 = arith.constant 0 : index
      %c0_30 = arith.constant 0 : index
      %41 = vector.load %arg7[%c0_29, %c0_30] : memref<1x32xf32, #tpu.memory_space<vmem>>, vector<1x32xf32>
      %42 = vector.broadcast %41 : vector<1x32xf32> to vector<8x32xf32>
      %43 = arith.addf %40, %42 : vector<8x32xf32>
      %c0_31 = arith.constant 0 : index
      %c0_32 = arith.constant 0 : index
      %c0_33 = arith.constant 0 : index
      %44 = vector.load %arg8[%c0_31, %c0_32, %c0_33] : memref<1x8x32xf32, #tpu.memory_space<vmem>>, vector<1x8x32xf32>
      %45 = vector.shape_cast %44 : vector<1x8x32xf32> to vector<8x32xf32>
      %46 = vector.shape_cast %43 : vector<8x32xf32> to vector<1x8x32xf32>
      tpu.vector_store %arg8[%c0_31, %c0_32, %c0_33], %46 {strides = array<i32>} : memref<1x8x32xf32, #tpu.memory_space<vmem>>, vector<1x8x32xf32>,
    } else {
    }
    return
  }
  func.func @transform_0(%arg0: i32, %arg1: i32) -> (i32, i32, i32) {
    %c0_i32 = arith.constant 0 : i32
    %c0_i32_0 = arith.constant 0 : i32
    %c0_i32_1 = arith.constant 0 : i32
    return %arg0, %c0_i32, %c0_i32_0 : i32, i32, i32
  }
  func.func @transform_1(%arg0: i32, %arg1: i32) -> (i32, i32, i32) {
    %c0_i32 = arith.constant 0 : i32
    %c0_i32_0 = arith.constant 0 : i32
    %c0_i32_1 = arith.constant 0 : i32
    return %arg1, %c0_i32, %c0_i32_0 : i32, i32, i32
  }
  func.func @transform_2(%arg0: i32, %arg1: i32) -> (i32, i32, i32) {
    %c0_i32 = arith.constant 0 : i32
    %c0_i32_0 = arith.constant 0 : i32
    %c0_i32_1 = arith.constant 0 : i32
    return %arg1, %c0_i32, %c0_i32_0 : i32, i32, i32
  }
  func.func @transform_3(%arg0: i32, %arg1: i32) -> (i32, i32, i32) {
    %c0_i32 = arith.constant 0 : i32
    %c0_i32_0 = arith.constant 0 : i32
    %c0_i32_1 = arith.constant 0 : i32
    return %arg1, %c0_i32, %c0_i32_0 : i32, i32, i32
  }
  func.func @transform_4(%arg0: i32, %arg1: i32) -> (i32, i32, i32) {
    %c0_i32 = arith.constant 0 : i32
    %c0_i32_0 = arith.constant 0 : i32
    %c0_i32_1 = arith.constant 0 : i32
    return %arg1, %c0_i32, %c0_i32_0 : i32, i32, i32
  }
  func.func @transform_5(%arg0: i32, %arg1: i32) -> (i32, i32) {
    %c0_i32 = arith.constant 0 : i32
    %c0_i32_0 = arith.constant 0 : i32
    %c0_i32_1 = arith.constant 0 : i32
    return %c0_i32, %c0_i32_0 : i32, i32
  }
  func.func @transform_6(%arg0: i32, %arg1: i32) -> (i32, i32, i32) {
    %c0_i32 = arith.constant 0 : i32
    %c0_i32_0 = arith.constant 0 : i32
    %c0_i32_1 = arith.constant 0 : i32
    return %arg0, %c0_i32, %c0_i32_0 : i32, i32, i32
  }
}

</mosaic_0001>

<llo_original>
// kernel: tpu_custom_call.1
$region0: #{tpu_custom_call.1}
  #allocation0 [shape = 'u32[]', space=smem, size = 0x4, offset = 0x4, fixed_abs, tag = 'smem constant byte address 0x4 - core index']
  #allocation1 [shape = 'u32[72,128]{1,0:T(1,128)}', space=vmem, size = 0x9000, scoped, tag = 'internal scratch']
  #allocation2 [shape = 'f32[8,32]{1,0:T(8,128)}', space=vmem, size = 0x1000, scoped, tag = 'scratch operand']
  %s0 = inlined_call_operand.vmem [shape: bf16[2,8,32], index: 0, kind: input, shape index: {}]
  %s1 = inlined_call_operand.vmem [shape: bf16[8,32,4], index: 1, kind: input, shape index: {}]
  %s2 = inlined_call_operand.vmem [shape: bf16[8,32,4], index: 2, kind: input, shape index: {}]
  %s3 = inlined_call_operand.vmem [shape: bf16[8,32,4], index: 3, kind: input, shape index: {}]
  %s4 = inlined_call_operand.vmem [shape: bf16[8,4,32], index: 4, kind: input, shape index: {}]
  %s5 = inlined_call_operand.vmem [shape: f32[1,32], index: 5, kind: input, shape index: {}]
  %s6 = inlined_call_operand.hbm [shape: f32[2,8,32], index: 6, kind: output, shape index: {}]
  %s7 = sld [smem:[#allocation0]]
  $region65: #{tpu_custom_call.1} parent=0
    _
  %s9 = ssub.s32 1, %s7
  %s10 = scalar_select 0, %s9, %s7
  $region1: #{tpu_custom_call.1} parent=0
    #allocation3 [shape = 'u8[8192]{0}', space=vmem, size = 0x2000, scoped, tag = 'output window, operand 0']
    #allocation4 [shape = 's32[2]{0}', space=sflag, size = 0x8, scoped, tag = 'scoped memory for tpu_custom_call.1']
    %11 = vsyncpa [#allocation4], 0
    %s12 = scalar_lea.sflag [#allocation4], 1
    %13 = vsyncpa %s12, 0
    loop: start=0, step=1, limit=18
    $region2: #{tpu_custom_call.1} parent=1 // loop_pre_header
      _
    $region3: #{tpu_custom_call.1} parent=1 // loop_header
      %s15 = sphi 0, %s19
      %p16 = scmp.ge.s32.totalorder %s15, 18
      %s22 = sphi 0, %s34
      %s23 = sphi 0, %s30
      %s24 = sphi 0, %s22
      %s25 = sphi 0, %s23
      %s26 = sphi 0, %s24
      %s27 = sphi 0, %s25
      %s37 = sphi 0, %s39
      %s40 = sphi 0, %s37
      %s41 = sphi 0, %s40
      %s57 = sphi 0, %s41
      %s63 = sphi 0, %s65
      %s66 = sphi 0, %s63
      %s67 = sphi 0, %s66
      %s83 = sphi 0, %s67
      %s89 = sphi 0, %s91
      %s92 = sphi 0, %s89
      %s93 = sphi 0, %s92
      %s109 = sphi 0, %s93
      %s115 = sphi 0, %s117
      %s118 = sphi 0, %s115
      %s119 = sphi 0, %s118
      %s135 = sphi 0, %s119
      %s141 = sphi 0, %s143
      %s144 = sphi 0, %s141
      %s145 = sphi 0, %s144
      %s161 = sphi 0, %s145
      %s165 = sphi 0, %s165
      %s167 = sphi 0, %s165
      %s168 = sphi 0, %s167
      %s182 = sphi 0, %s168
      %s188 = sphi 0, %s190
      %s191 = sphi 0, %s188
      %s192 = sphi 0, %s191
      %s208 = sphi 0, %s192
    $region4: #{tpu_custom_call.1} parent=1 // loop_header_branch
      %18 = sbr.rel (%p16) target = $region8
    $region5: #{tpu_custom_call.1} parent=1 // loop_body
      %s20 = ssub.s32 %s15, 1
      %s21 = ssub.s32 %s15, 2
      %s28 = sadd.s32 1, %s23
      %p29 = scmp.ge.s32.totalorder %s28, 8
      %s30 = scalar_select %p29, 0, %s28
      %s31 = sadd.s32 1, %s22
      %s32 = scalar_select %p29, %s31, %s22
      %p33 = scmp.ge.s32.totalorder %s32, 2
      %s34 = scalar_select %p33, 0, %s32
      %s35 = ssub.s32 %s22, %s34
      %p36 = scmp.eq.s32.totalorder %s35, 0
      %s38 = sadd.s32 %s37, 1
      %s39 = scalar_select %p36, %s37, %s38
      %p42 = pneg %p36
      %p43 = scmp.eq.s32.totalorder %s15, 15
      %p44 = por %p42, %p43
      %p45 = scmp.ne.s32.totalorder %s37, %s40
      %p46 = scmp.eq.s32.totalorder %s15, 0
      %p47 = por %p45, %p46
      %p48 = scmp.ne.s32.totalorder %s37, %s40
      %p49 = scmp.eq.s32.totalorder %s20, 15
      %p50 = por %p48, %p49
      %p51 = scmp.ne.s32.totalorder %s40, %s41
      %p52 = scmp.eq.s32.totalorder %s20, 0
      %p53 = por %p51, %p52
      %p54 = scmp.ne.s32.totalorder %s40, %s41
      %p55 = scmp.eq.s32.totalorder %s21, 15
      %p56 = por %p54, %p55
      %p58 = scmp.ne.s32.totalorder %s41, %s57
      %p59 = scmp.eq.s32.totalorder %s21, 0
      %p60 = por %p58, %p59
      %s61 = ssub.s32 %s23, %s30
      %p62 = scmp.eq.s32.totalorder %s61, 0
      %s64 = sadd.s32 %s63, 1
      %s65 = scalar_select %p62, %s63, %s64
      %p68 = pneg %p62
      %p69 = scmp.eq.s32.totalorder %s15, 15
      %p70 = por %p68, %p69
      %p71 = scmp.ne.s32.totalorder %s63, %s66
      %p72 = scmp.eq.s32.totalorder %s15, 0
      %p73 = por %p71, %p72
      %p74 = scmp.ne.s32.totalorder %s63, %s66
      %p75 = scmp.eq.s32.totalorder %s20, 15
      %p76 = por %p74, %p75
      %p77 = scmp.ne.s32.totalorder %s66, %s67
      %p78 = scmp.eq.s32.totalorder %s20, 0
      %p79 = por %p77, %p78
      %p80 = scmp.ne.s32.totalorder %s66, %s67
      %p81 = scmp.eq.s32.totalorder %s21, 15
      %p82 = por %p80, %p81
      %p84 = scmp.ne.s32.totalorder %s67, %s83
      %p85 = scmp.eq.s32.totalorder %s21, 0
      %p86 = por %p84, %p85
      %s87 = ssub.s32 %s23, %s30
      %p88 = scmp.eq.s32.totalorder %s87, 0
      %s90 = sadd.s32 %s89, 1
      %s91 = scalar_select %p88, %s89, %s90
      %p94 = pneg %p88
      %p95 = scmp.eq.s32.totalorder %s15, 15
      %p96 = por %p94, %p95
      %p97 = scmp.ne.s32.totalorder %s89, %s92
      %p98 = scmp.eq.s32.totalorder %s15, 0
      %p99 = por %p97, %p98
      %p100 = scmp.ne.s32.totalorder %s89, %s92
      %p101 = scmp.eq.s32.totalorder %s20, 15
      %p102 = por %p100, %p101
      %p103 = scmp.ne.s32.totalorder %s92, %s93
      %p104 = scmp.eq.s32.totalorder %s20, 0
      %p105 = por %p103, %p104
      %p106 = scmp.ne.s32.totalorder %s92, %s93
      %p107 = scmp.eq.s32.totalorder %s21, 15
      %p108 = por %p106, %p107
      %p110 = scmp.ne.s32.totalorder %s93, %s109
      %p111 = scmp.eq.s32.totalorder %s21, 0
      %p112 = por %p110, %p111
      %s113 = ssub.s32 %s23, %s30
      %p114 = scmp.eq.s32.totalorder %s113, 0
      %s116 = sadd.s32 %s115, 1
      %s117 = scalar_select %p114, %s115, %s116
      %p120 = pneg %p114
      %p121 = scmp.eq.s32.totalorder %s15, 15
      %p122 = por %p120, %p121
      %p123 = scmp.ne.s32.totalorder %s115, %s118
      %p124 = scmp.eq.s32.totalorder %s15, 0
      %p125 = por %p123, %p124
      %p126 = scmp.ne.s32.totalorder %s115, %s118
      %p127 = scmp.eq.s32.totalorder %s20, 15
      %p128 = por %p126, %p127
      %p129 = scmp.ne.s32.totalorder %s118, %s119
      %p130 = scmp.eq.s32.totalorder %s20, 0
      %p131 = por %p129, %p130
      %p132 = scmp.ne.s32.totalorder %s118, %s119
      %p133 = scmp.eq.s32.totalorder %s21, 15
      %p134 = por %p132, %p133
      %p136 = scmp.ne.s32.totalorder %s119, %s135
      %p137 = scmp.eq.s32.totalorder %s21, 0
      %p138 = por %p136, %p137
      %s139 = ssub.s32 %s23, %s30
      %p140 = scmp.eq.s32.totalorder %s139, 0
      %s142 = sadd.s32 %s141, 1
      %s143 = scalar_select %p140, %s141, %s142
      %p146 = pneg %p140
      %p147 = scmp.eq.s32.totalorder %s15, 15
      %p148 = por %p146, %p147
      %p149 = scmp.ne.s32.totalorder %s141, %s144
      %p150 = scmp.eq.s32.totalorder %s15, 0
      %p151 = por %p149, %p150
      %p152 = scmp.ne.s32.totalorder %s141, %s144
      %p153 = scmp.eq.s32.totalorder %s20, 15
      %p154 = por %p152, %p153
      %p155 = scmp.ne.s32.totalorder %s144, %s145
      %p156 = scmp.eq.s32.totalorder %s20, 0
      %p157 = por %p155, %p156
      %p158 = scmp.ne.s32.totalorder %s144, %s145
      %p159 = scmp.eq.s32.totalorder %s21, 15
      %p160 = por %p158, %p159
      %p162 = scmp.ne.s32.totalorder %s145, %s161
      %p163 = scmp.eq.s32.totalorder %s21, 0
      %p164 = por %p162, %p163
      %s166 = sadd.s32 %s165, 1
      %p169 = scmp.eq.s32.totalorder %s15, 15
      %p170 = scmp.ne.s32.totalorder %s165, %s167
      %p171 = scmp.eq.s32.totalorder %s15, 0
      %p172 = por %p170, %p171
      %p173 = scmp.ne.s32.totalorder %s165, %s167
      %p174 = scmp.eq.s32.totalorder %s20, 15
      %p175 = por %p173, %p174
      %p176 = scmp.ne.s32.totalorder %s167, %s168
      %p177 = scmp.eq.s32.totalorder %s20, 0
      %p178 = por %p176, %p177
      %p179 = scmp.ne.s32.totalorder %s167, %s168
      %p180 = scmp.eq.s32.totalorder %s21, 15
      %p181 = por %p179, %p180
      %p183 = scmp.ne.s32.totalorder %s168, %s182
      %p184 = scmp.eq.s32.totalorder %s21, 0
      %p185 = por %p183, %p184
      %s186 = ssub.s32 %s22, %s34
      %p187 = scmp.eq.s32.totalorder %s186, 0
      %s189 = sadd.s32 %s188, 1
      %s190 = scalar_select %p187, %s188, %s189
      %p193 = pneg %p187
      %p194 = scmp.eq.s32.totalorder %s15, 15
      %p195 = por %p193, %p194
      %p196 = scmp.ne.s32.totalorder %s188, %s191
      %p197 = scmp.eq.s32.totalorder %s15, 0
      %p198 = por %p196, %p197
      %p199 = scmp.ne.s32.totalorder %s188, %s191
      %p200 = scmp.eq.s32.totalorder %s20, 15
      %p201 = por %p199, %p200
      %p202 = scmp.ne.s32.totalorder %s191, %s192
      %p203 = scmp.eq.s32.totalorder %s20, 0
      %p204 = por %p202, %p203
      %p205 = scmp.ne.s32.totalorder %s191, %s192
      %p206 = scmp.eq.s32.totalorder %s21, 15
      %p207 = por %p205, %p206
      %p209 = scmp.ne.s32.totalorder %s192, %s208
      %p210 = scmp.eq.s32.totalorder %s21, 0
      %p211 = por %p209, %p210
      %p212 = scmp.le.s32.totalorder 1, %s15
      %p213 = scmp.lt.s32.totalorder %s15, 17
      %p214 = pnand %p212, %p213
      %p215 = pneg %p214
      // Predicated region
      $region9: #{tpu_custom_call.1} parent=5 // pred_check
        _
      $region10: #{tpu_custom_call.1} parent=5 // pred_check_branch
        %217 = sbr.rel (%p214) target = $region12
      $region11: #{tpu_custom_call.1} parent=5 // pred_region
        %s218 = ssub.s32 %s15, 1
        // Predicated region
        $region13: #{tpu_custom_call.1} parent=11 // pred_check
          %p219 = pneg %p178
        $region14: #{tpu_custom_call.1} parent=11 // pred_check_branch
          %221 = sbr.rel (%p219) target = $region16
        $region15: #{tpu_custom_call.1} parent=11 // pred_region
          _
        $region16: #{tpu_custom_call.1} parent=11 // pred_fallthru
          _
      $region12: #{tpu_custom_call.1} parent=5 // pred_fallthru
        _
      %p222 = scmp.lt.s32.totalorder %s15, 16
      // Predicated region
      $region17: #{tpu_custom_call.1} parent=5 // pred_check
        %p223 = pneg %p222
      $region18: #{tpu_custom_call.1} parent=5 // pred_check_branch
        %225 = sbr.rel (%p223) target = $region20
      $region19: #{tpu_custom_call.1} parent=5 // pred_region
        // Predicated region
        $region21: #{tpu_custom_call.1} parent=19 // pred_check
          %p226 = pneg %p47
        $region22: #{tpu_custom_call.1} parent=19 // pred_check_branch
          %228 = sbr.rel (%p226) target = $region24
        $region23: #{tpu_custom_call.1} parent=19 // pred_region
          %p229 = scmp.lt.s32.totalorder %s22, 1
          %s230 = scalar_select %p229, %s22, 1
          %s231 = smul.addr %s230, 4
          %s232 = scalar_lea.vmem %s0, %s231
        $region24: #{tpu_custom_call.1} parent=19 // pred_fallthru
          _
        // Predicated region
        $region25: #{tpu_custom_call.1} parent=19 // pred_check
          %p233 = pneg %p73
        $region26: #{tpu_custom_call.1} parent=19 // pred_check_branch
          %235 = sbr.rel (%p233) target = $region28
        $region27: #{tpu_custom_call.1} parent=19 // pred_region
          %p236 = scmp.lt.s32.totalorder %s23, 7
          %s237 = scalar_select %p236, %s23, 7
          %s238 = smul.addr %s237, 4
          %s239 = smul.addr %s238, 4
          %s240 = scalar_lea.vmem %s1, %s239
        $region28: #{tpu_custom_call.1} parent=19 // pred_fallthru
          _
        // Predicated region
        $region29: #{tpu_custom_call.1} parent=19 // pred_check
          %p241 = pneg %p99
        $region30: #{tpu_custom_call.1} parent=19 // pred_check_branch
          %243 = sbr.rel (%p241) target = $region32
        $region31: #{tpu_custom_call.1} parent=19 // pred_region
          %p244 = scmp.lt.s32.totalorder %s23, 7
          %s245 = scalar_select %p244, %s23, 7
          %s246 = smul.addr %s245, 4
          %s247 = smul.addr %s246, 4
          %s248 = scalar_lea.vmem %s2, %s247
        $region32: #{tpu_custom_call.1} parent=19 // pred_fallthru
          _
        // Predicated region
        $region33: #{tpu_custom_call.1} parent=19 // pred_check
          %p249 = pneg %p125
        $region34: #{tpu_custom_call.1} parent=19 // pred_check_branch
          %251 = sbr.rel (%p249) target = $region36
        $region35: #{tpu_custom_call.1} parent=19 // pred_region
          %p252 = scmp.lt.s32.totalorder %s23, 7
          %s253 = scalar_select %p252, %s23, 7
          %s254 = smul.addr %s253, 4
          %s255 = smul.addr %s254, 4
          %s256 = scalar_lea.vmem %s3, %s255
        $region36: #{tpu_custom_call.1} parent=19 // pred_fallthru
          _
        // Predicated region
        $region37: #{tpu_custom_call.1} parent=19 // pred_check
          %p257 = pneg %p151
        $region38: #{tpu_custom_call.1} parent=19 // pred_check_branch
          %259 = sbr.rel (%p257) target = $region40
        $region39: #{tpu_custom_call.1} parent=19 // pred_region
          %p260 = scmp.lt.s32.totalorder %s23, 7
          %s261 = scalar_select %p260, %s23, 7
          %s262 = smul.addr %s261, 2
          %s263 = scalar_lea.vmem %s4, %s262
        $region40: #{tpu_custom_call.1} parent=19 // pred_fallthru
          _
      $region20: #{tpu_custom_call.1} parent=5 // pred_fallthru
        _
      %p264 = scmp.le.s32.totalorder 1, %s15
      %p265 = scmp.lt.s32.totalorder %s15, 17
      %p266 = pnand %p264, %p265
      %p267 = pneg %p266
      // Predicated region
      $region41: #{tpu_custom_call.1} parent=5 // pred_check
        _
      $region42: #{tpu_custom_call.1} parent=5 // pred_check_branch
        %269 = sbr.rel (%p266) target = $region44
      $region43: #{tpu_custom_call.1} parent=5 // pred_region
        %s270 = ssub.s32 %s15, 1
        %p271 = scmp.lt.s32.totalorder %s24, 1
        %s272 = scalar_select %p271, %s24, 1
        %s273 = smul.addr %s272, 4
        %s274 = scalar_lea.vmem %s0, %s273
        %p275 = pneg %p53
        %p276 = pneg %p50
        %p277 = scmp.lt.s32.totalorder %s25, 7
        %s278 = scalar_select %p277, %s25, 7
        %s279 = smul.addr %s278, 4
        %s280 = smul.addr %s279, 4
        %s281 = scalar_lea.vmem %s1, %s280
        %p282 = pneg %p79
        %p283 = pneg %p76
        %p284 = scmp.lt.s32.totalorder %s25, 7
        %s285 = scalar_select %p284, %s25, 7
        %s286 = smul.addr %s285, 4
        %s287 = smul.addr %s286, 4
        %s288 = scalar_lea.vmem %s2, %s287
        %p289 = pneg %p105
        %p290 = pneg %p102
        %p291 = scmp.lt.s32.totalorder %s25, 7
        %s292 = scalar_select %p291, %s25, 7
        %s293 = smul.addr %s292, 4
        %s294 = smul.addr %s293, 4
        %s295 = scalar_lea.vmem %s3, %s294
        %p296 = pneg %p131
        %p297 = pneg %p128
        %p298 = scmp.lt.s32.totalorder %s25, 7
        %s299 = scalar_select %p298, %s25, 7
        %s300 = smul.addr %s299, 2
        %s301 = scalar_lea.vmem %s4, %s300
        %p302 = pneg %p157
        %p303 = pneg %p154
        %p304 = pneg %p178
        %p305 = pneg %p175
        %p306 = pneg %p204
        %p307 = pneg %p201
        %s308 = sand.u32 %s191, 1
        %s309 = scalar_lea.sflag [#allocation4], %s308
        %s310 = sand.u32 %s191, 1
        %s311 = smul.addr %s310, 8
        %s312 = scalar_lea.vmem [#allocation3], %s311
        %p313 = scmp.lt.s32.totalorder %s24, 1
        %s314 = scalar_select %p313, %s24, 1
        %s315 = smul.addr %s314, 4
        %s316 = scalar_lea.vmem %s0, %s315
        %p317 = scmp.lt.s32.totalorder %s25, 7
        %s318 = scalar_select %p317, %s25, 7
        %s319 = smul.addr %s318, 4
        %s320 = smul.addr %s319, 4
        %s321 = scalar_lea.vmem %s1, %s320
        %p322 = scmp.lt.s32.totalorder %s25, 7
        %s323 = scalar_select %p322, %s25, 7
        %s324 = smul.addr %s323, 4
        %s325 = smul.addr %s324, 4
        %s326 = scalar_lea.vmem %s2, %s325
        %p327 = scmp.lt.s32.totalorder %s25, 7
        %s328 = scalar_select %p327, %s25, 7
        %s329 = smul.addr %s328, 4
        %s330 = smul.addr %s329, 4
        %s331 = scalar_lea.vmem %s3, %s330
        %p332 = scmp.lt.s32.totalorder %s25, 7
        %s333 = scalar_select %p332, %s25, 7
        %s334 = smul.addr %s333, 2
        %s335 = scalar_lea.vmem %s4, %s334
        %p337 = scmp.eq.s32.totalorder %s25, 0
        // Predicated region
        $region45: #{tpu_custom_call.1} parent=43 // pred_check
          %p338 = pneg %p337
        $region46: #{tpu_custom_call.1} parent=43 // pred_check_branch
          %340 = sbr.rel (%p338) target = $region48
        $region47: #{tpu_custom_call.1} parent=43 // pred_region
          %vm341 = vcmask 261120
          %342 = vst.msk [vmem:[#allocation2] sm:$0xff] %vm341, 0.0
        $region48: #{tpu_custom_call.1} parent=43 // pred_fallthru
          _
        %v343 = vld [vmem:[%s316] sm:$0xf]
        %v344 = vld [vmem:[%s321] sm:$0xf]
        %v345 = vld [vmem:[%s321 + $0x4] sm:$0xf]
        %v346 = vld [vmem:[%s321 + $0x8] sm:$0xf]
        %v347 = vld [vmem:[%s321 + $0xc] sm:$0xf]
        %v348 = vld [vmem:[%s326] sm:$0xf]
        %v349 = vld [vmem:[%s326 + $0x4] sm:$0xf]
        %v350 = vld [vmem:[%s326 + $0x8] sm:$0xf]
        %v351 = vld [vmem:[%s326 + $0xc] sm:$0xf]
        %v352 = vld [vmem:[%s331] sm:$0xf]
        %v353 = vld [vmem:[%s331 + $0x4] sm:$0xf]
        %v354 = vld [vmem:[%s331 + $0x8] sm:$0xf]
        %v355 = vld [vmem:[%s331 + $0xc] sm:$0xf]
        %v360 = vunpack.c.l.b16 %v344
        %v361 = vunpack.c.l.b16 %v345
        %v362 = vunpack.c.l.b16 %v346
        %v363 = vunpack.c.l.b16 %v347
        %v364 = vpack.c.b16 %v361, %v360
        %v365 = vpack.c.b16 %v363, %v362
        %vm368 = vcmask 261120
        %v370 = vsel %vm368, %v343, 0
        %372 = vmatpush.bf16.msra.mxu0 0
        %373 = vmatpush.bf16.msra.mxu0 0
        %374 = vmatpush.bf16.msra.mxu0 0
        %375 = vmatpush.bf16.msra.mxu0 0
        %376 = vmatpush.bf16.msra.mxu0 0
        %377 = vmatpush.bf16.msra.mxu0 0
        %378 = vmatpush.bf16.msra.mxu0 %v365
        %379 = vmatpush.bf16.msra.mxu0 %v364
        %380 = vmatmul.bf16.gmra.mxu0 %v370
        %v381 = vpop.f32.mrf.mxu0
        %v382 = vadd.f32 0.0, %v381
        %v383 = vpop.f32.mrf.mxu0
        %384 = vdwg.mxu0
        %v385 = vpack.c.bf16 %v382, %v382
        %v390 = vunpack.c.l.b16 %v348
        %v391 = vunpack.c.l.b16 %v349
        %v392 = vunpack.c.l.b16 %v350
        %v393 = vunpack.c.l.b16 %v351
        %v394 = vpack.c.b16 %v391, %v390
        %v395 = vpack.c.b16 %v393, %v392
        %398 = vmatpush.bf16.msra.mxu0 0
        %399 = vmatpush.bf16.msra.mxu0 0
        %400 = vmatpush.bf16.msra.mxu0 0
        %401 = vmatpush.bf16.msra.mxu0 0
        %402 = vmatpush.bf16.msra.mxu0 0
        %403 = vmatpush.bf16.msra.mxu0 0
        %404 = vmatpush.bf16.msra.mxu0 %v395
        %405 = vmatpush.bf16.msra.mxu0 %v394
        %406 = vmatmul.bf16.gmra.mxu0 %v370
        %v407 = vpop.f32.mrf.mxu0
        %v408 = vadd.f32 0.0, %v407
        %v409 = vpop.f32.mrf.mxu0
        %410 = vdwg.mxu0
        %v411 = vpack.c.bf16 %v408, %v408
        %v416 = vunpack.c.l.b16 %v352
        %v417 = vunpack.c.l.b16 %v353
        %v418 = vunpack.c.l.b16 %v354
        %v419 = vunpack.c.l.b16 %v355
        %v420 = vpack.c.b16 %v417, %v416
        %v421 = vpack.c.b16 %v419, %v418
        %424 = vmatpush.bf16.msra.mxu0 0
        %425 = vmatpush.bf16.msra.mxu0 0
        %426 = vmatpush.bf16.msra.mxu0 0
        %427 = vmatpush.bf16.msra.mxu0 0
        %428 = vmatpush.bf16.msra.mxu0 0
        %429 = vmatpush.bf16.msra.mxu0 0
        %430 = vmatpush.bf16.msra.mxu0 %v421
        %431 = vmatpush.bf16.msra.mxu0 %v420
        %432 = vmatmul.bf16.gmra.mxu0 %v370
        %v433 = vpop.f32.mrf.mxu0
        %v434 = vadd.f32 0.0, %v433
        %v435 = vpop.f32.mrf.mxu0
        %436 = vdwg.mxu0
        %v437 = vpack.c.bf16 %v434, %v434
        %vm438 = vcmask 31744
        %v440 = vsel %vm438, %v385, 0
        %v443 = vsel %vm438, %v411, 0
        %445 = vmatpush.bf16.xpose.msra.mxu0 0
        %446 = vmatpush.bf16.xpose.msra.mxu0 0
        %447 = vmatpush.bf16.xpose.msra.mxu0 0
        %448 = vmatpush.bf16.xpose.msra.mxu0 0
        %449 = vmatpush.bf16.xpose.msra.mxu0 0
        %450 = vmatpush.bf16.xpose.msra.mxu0 0
        %451 = vmatpush.bf16.xpose.msra.mxu0 0
        %452 = vmatpush.bf16.xpose.msra.mxu0 %v443
        %453 = vmatmul.bf16.gmra.mxu0 %v440
        %v454 = vpop.f32.mrf.mxu0
        %v455 = vadd.f32 0.0, %v454
        %v456 = vpop.f32.mrf.mxu0
        %457 = vdwg.mxu0
        %vm458 = vcmask 64512
        %v459 = vsel %vm458, %v455, -inf
        %460 = vmax.xlane.f32.xlu0 %v459
        %v461 = vpop.xlane.xlu0 %460
        %v462 = vsub.f32 %v455, %v461
        %v463 = vmul.f32 %v462, 1.442695
        %v464 = vpow.pop %v463
        %v465 = vsel %vm458, %v464, 0.0
        %466 = vadd.xlane.f32.xlu0 %v465
        %v467 = vpop.xlane.xlu0 %466
        %v468 = vrcp.pop %v467
        %v469 = vmul.f32 %v464, %v468
        %v470 = vpack.c.bf16 %v469, %v469
        %v472 = vsel %vm458, %v470, 0
        %vm474 = vcmask 1043456
        %v476 = vsel %vm474, %v437, 0
        %478 = vmatpush.bf16.msra.mxu0 0
        %479 = vmatpush.bf16.msra.mxu0 0
        %480 = vmatpush.bf16.msra.mxu0 0
        %481 = vmatpush.bf16.msra.mxu0 0
        %482 = vmatpush.bf16.msra.mxu0 0
        %483 = vmatpush.bf16.msra.mxu0 0
        %484 = vmatpush.bf16.msra.mxu0 0
        %485 = vmatpush.bf16.msra.mxu0 %v476
        %486 = vmatmul.bf16.gmra.mxu0 %v472
        %v487 = vpop.f32.mrf.mxu0
        %v488 = vadd.f32 0.0, %v487
        %v489 = vpop.f32.mrf.mxu0
        %490 = vdwg.mxu0
        %v491 = vld [vmem:[#allocation2] sm:$0xff]
        %v492 = vpack.c.bf16 %v488, %v488
        %v493 = vld [vmem:[%s335] sm:$0x3]
        %v495 = vsel %vm438, %v492, 0
        %vm497 = vcmask 1041408
        %v499 = vsel %vm497, %v493, 0
        %501 = vmatpush.bf16.msra.mxu0 0
        %502 = vmatpush.bf16.msra.mxu0 0
        %503 = vmatpush.bf16.msra.mxu0 0
        %504 = vmatpush.bf16.msra.mxu0 0
        %505 = vmatpush.bf16.msra.mxu0 0
        %506 = vmatpush.bf16.msra.mxu0 0
        %507 = vmatpush.bf16.msra.mxu0 0
        %508 = vmatpush.bf16.msra.mxu0 %v499
        %509 = vmatmul.bf16.gmra.mxu0 %v495
        %v510 = vpop.f32.mrf.mxu0
        %v511 = vadd.f32 0.0, %v510
        %v512 = vpop.f32.mrf.mxu0
        %513 = vdwg.mxu0
        %v514 = vadd.f32 %v491, %v511
        %515 = vst.msk [vmem:[#allocation2] sm:$0xff] %vm368, %v514
        %p516 = scmp.eq.s32.totalorder %s25, 7
        // Predicated region
        $region49: #{tpu_custom_call.1} parent=43 // pred_check
          %p517 = pneg %p516
        $region50: #{tpu_custom_call.1} parent=43 // pred_check_branch
          %519 = sbr.rel (%p517) target = $region52
        $region51: #{tpu_custom_call.1} parent=43 // pred_region
          %v520 = vld [vmem:[#allocation2] sm:$0xff]
          %v521 = vld [vmem:[%s5] sm:$0x1]
          %v523 = vperm.slane %v521, 0
          %v525 = vadd.f32 %v520, %v523
          %526 = vst.msk [vmem:[%s312] sm:$0xff] %vm368, %v525
        $region52: #{tpu_custom_call.1} parent=43 // pred_fallthru
          _
        %s527 = sand.u32 %s191, 1
        %s528 = scalar_lea.sflag [#allocation4], %s527
        %s529 = sand.u32 %s191, 1
        %s530 = smul.addr %s529, 8
        %s531 = scalar_lea.vmem [#allocation3], %s530
        // Predicated region
        $region53: #{tpu_custom_call.1} parent=43 // pred_check
          %p532 = pneg %p201
        $region54: #{tpu_custom_call.1} parent=43 // pred_check_branch
          %534 = sbr.rel (%p532) target = $region56
        $region55: #{tpu_custom_call.1} parent=43 // pred_region
          %536 = vsyncadd %s528, 0
          %s537 = smul.addr %s24, 8
          %s538 = scalar_lea.hbm %s6, %s537
          %s540 = sshll.u32 %s531, 4
          %s541 = int_to_ptr.vmem [resolvable:$true] %s540
          %s542 = sshll.u32 %s538, 4
          %s543 = int_to_ptr.hbm [resolvable:$true] %s542
          %545 = dma.vmem_to_hbm [thread:$0]  %s541, 128, %s543, %s528
        $region56: #{tpu_custom_call.1} parent=43 // pred_fallthru
          _
      $region44: #{tpu_custom_call.1} parent=5 // pred_fallthru
        _
      %p546 = scmp.le.s32.totalorder 2, %s15
      // Predicated region
      $region57: #{tpu_custom_call.1} parent=5 // pred_check
        %p547 = pneg %p546
      $region58: #{tpu_custom_call.1} parent=5 // pred_check_branch
        %549 = sbr.rel (%p547) target = $region60
      $region59: #{tpu_custom_call.1} parent=5 // pred_region
        %s550 = ssub.s32 %s15, 2
        // Predicated region
        $region61: #{tpu_custom_call.1} parent=59 // pred_check
          %p551 = pneg %p207
        $region62: #{tpu_custom_call.1} parent=59 // pred_check_branch
          %553 = sbr.rel (%p551) target = $region64
        $region63: #{tpu_custom_call.1} parent=59 // pred_region
          %s554 = sand.u32 %s192, 1
          %s555 = scalar_lea.sflag [#allocation4], %s554
          %s556 = sand.u32 %s192, 1
          %s557 = smul.addr %s556, 8
          %s558 = scalar_lea.vmem [#allocation3], %s557
          %560 = dma.done %s555, 128
        $region64: #{tpu_custom_call.1} parent=59 // pred_fallthru
          _
      $region60: #{tpu_custom_call.1} parent=5 // pred_fallthru
        _
    $region6: #{tpu_custom_call.1} parent=1 // loop_footer
      %s19 = sadd.s32 1, %s15
    $region7: #{tpu_custom_call.1} parent=1 // loop_footer_branch
      %14 = sbr.rel target = $region3
    $region8: #{tpu_custom_call.1} parent=1 // loop_exit
      _
    %561 = vsyncpa [#allocation4], 1
    %s562 = scalar_lea.sflag [#allocation4], 1
    %563 = vsyncpa %s562, 1

</llo_original>
